<compile_context>
chip_gen: v6e
topology: v6e:2x2x1
jax: 0.10.0
libtpu: 0.0.40
codegen_flags: <defaults>
</compile_context>

<pallas_src>
import functools

import jax
import jax.numpy as jnp
from jax.experimental import pallas as pl
from jax.experimental.pallas import tpu as pltpu

_LANE = 128  # vreg lane width (last dim)


def _round_up(n, m):
    return ((n + m - 1) // m) * m


def _pad_axis(a, axis, target):
    pad = target - a.shape[axis]
    if pad <= 0:
        return a
    widths = [(0, 0)] * a.ndim
    widths[axis] = (0, pad)
    return jnp.pad(a, widths)


def _sublane(dtype):
    # Minimum second-to-last tile size is dtype-dependent (f32:8, bf16:16, int8:32).
    return {1: 32, 2: 16, 4: 8}.get(jnp.dtype(dtype).itemsize, 8)


def prepare_lr_params(params, compute_dtype=jnp.float32):
    """One-time preparation of LRModel params for the fused Pallas kernel.

    * Weights are stored as (in, out) (transpose of nn.Linear's (out, in)).
    * Hidden dims are zero-padded to multiples of 128 (numerically exact:
      tanh(0)=0, relu(0)=0, zero weight rows/cols) -- a no-op for the default
      layerSize (512 / 128).
    * Weights are cast to `compute_dtype` HERE (hoisted out of the per-call
      path); biases stay f32 so bias-add / activation math stays f32
      (v5e has no bf16 VPU/EUP, and it protects the small output layer).
    * The first-layer contraction dim and the final output dim are NOT padded
      (full-dim blocks are legal and save HBM traffic).
    """
    num_linear = len(params)
    weights, biases = [], []
    in_dim = params[0][0].shape[0]  # first contraction dim: unpadded
    for li, (w, b) in enumerate(params):
        if li == num_linear - 1:
            out_dim = w.shape[1]  # final output dim: unpadded (small n_out)
        else:
            out_dim = _round_up(w.shape[1], _LANE)
        w_p = _pad_axis(_pad_axis(w, 0, in_dim), 1, out_dim)
        b_p = _pad_axis(b, 0, out_dim).reshape(1, out_dim)
        weights.append(jnp.asarray(w_p, compute_dtype))
        biases.append(jnp.asarray(b_p, jnp.float32))
        in_dim = out_dim
    return weights, biases


def _fused_mlp_kernel(*refs, num_linear, compute_dtype):
    """Whole MLP (Linear->Tanh->[Linear->ReLU]*->Linear) for one batch tile.

    refs = (x_ref, w0, b0, ..., w{L-1}, b{L-1}, o_ref). Hidden activations stay
    in vregs/VMEM (carried in compute_dtype between layers); weights/biases are
    VMEM-resident with constant index maps, so only x and the final output
    touch HBM.
    """
    x_ref = refs[0]
    o_ref = refs[1 + 2 * num_linear]

    h = x_ref[...].astype(compute_dtype)  # MXU operand dtype (no-op for f32)
    for li in range(num_linear):
        w_ref = refs[1 + 2 * li]
        b_ref = refs[2 + 2 * li]
        # MXU matmul with f32 accumulation; bias add + activation in f32.
        y = jnp.dot(h, w_ref[...], preferred_element_type=jnp.float32)
        y = y + b_ref[...]  # (1, N) bias broadcasts over rows
        if li == num_linear - 1:
            h = y  # final Linear: no activation
        elif li == 0:
            h = jnp.tanh(y).astype(compute_dtype)      # EUP tanh, then carry in compute dtype
        else:
            h = jnp.maximum(y, 0.0).astype(compute_dtype)
    o_ref[...] = h.astype(o_ref.dtype)


def _call_fused(weights, biases, x_p, tm, n_out, compute_dtype, vmem_limit,
                buffered_const):
    num_linear = len(weights)
    m_pad, k = x_p.shape
    grid = (m_pad // tm,)

    const_kwargs = {}
    if buffered_const:
        # Constant block index -> double buffering buys nothing; halve VMEM.
        const_kwargs = dict(pipeline_mode=pl.Buffered(1))

    in_specs = [pl.BlockSpec((tm, k), lambda i: (i, 0))]  # x batch tile (K unpadded)
    flat_inputs = [x_p]
    for w, b in zip(weights, biases):
        in_specs.append(pl.BlockSpec(w.shape, lambda i: (0, 0), **const_kwargs))
        in_specs.append(pl.BlockSpec(b.shape, lambda i: (0, 0), **const_kwargs))
        flat_inputs.append(w)
        flat_inputs.append(b)

    kernel = functools.partial(
        _fused_mlp_kernel, num_linear=num_linear, compute_dtype=compute_dtype
    )

    return pl.pallas_call(
        kernel,
        out_shape=jax.ShapeDtypeStruct((m_pad, n_out), x_p.dtype),
        grid_spec=pltpu.PrefetchScalarGridSpec(
            num_scalar_prefetch=0,
            grid=grid,
            in_specs=in_specs,
            out_specs=pl.BlockSpec((tm, n_out), lambda i: (i, 0)),
        ),
        compiler_params=pltpu.CompilerParams(
            # Batch axis is data-parallel -> megacore / v7x 2-TC sharding.
            dimension_semantics=("parallel",),
            vmem_limit_bytes=vmem_limit,
        ),
    )(*flat_inputs)


def lr_model_forward(prepared, x, *, max_tm=512):
    """Fused Pallas forward pass mirroring LRModel.forward (nn.Sequential).

    prepared: output of prepare_lr_params (weights as (in, out), biases (1, out)).
    x: (M, inputsSize). Returns (M, outputsSize) in x.dtype.
    """
    weights, biases = prepared
    compute_dtype = weights[0].dtype
    M, K = x.shape
    n_out = weights[-1].shape[1]

    # ---- batch tile selection (balanced; dtype-derived sublane minimum) ----
    sub = _sublane(x.dtype)
    if M <= max_tm:
        tm = _round_up(M, sub)
    else:
        n_tiles = pl.cdiv(M, max_tm)          # balanced tiles: avoid a nearly
        tm = _round_up(pl.cdiv(M, n_tiles), sub)  # empty trailing tile

    # ---- explicit VMEM budget (v7x physical VMEM is only 64 MiB per TC) ----
    const_bytes = sum(int(w.size) * w.dtype.itemsize for w in weights)
    const_bytes += sum(int(b.size) * b.dtype.itemsize for b in biases)
    widest = max([w.shape[1] for w in weights] + [K])

    def _budget(t):
        io = 2 * t * K * x.dtype.itemsize + 2 * t * n_out * x.dtype.itemsize
        act = 2 * t * widest * 4          # f32 intermediate headroom
        return io + 2 * const_bytes + act  # 2x consts: safe even w/o Buffered(1)

    cap = 48 << 20  # leave headroom under v7x's 64 MiB
    while tm > sub and _budget(tm) > cap:
        tm = _round_up(max(sub, tm // 2), sub)
    vmem_limit = int(min(60 << 20, max(32 << 20, _budget(tm) + (4 << 20))))

    m_pad = _round_up(M, tm)
    x_p = _pad_axis(x, 0, m_pad)  # no-op when M is tile-aligned

    try:
        out = _call_fused(weights, biases, x_p, tm, n_out, compute_dtype,
                          vmem_limit, buffered_const=True)
    except Exception:
        # Fallback for JAX versions where pipeline_mode=pl.Buffered(1) on
        # constant-index blocks is unsupported.
        out = _call_fused(weights, biases, x_p, tm, n_out, compute_dtype,
                          vmem_limit, buffered_const=False)

    return out if m_pad == M else out[:M]


def init_lr_model_params(key, inputs_size, outputs_size, num_layers=1, layer_size=512):
    """Deterministic params matching PyTorch nn.Linear default init
    (uniform(-1/sqrt(fan_in), 1/sqrt(fan_in))). Weights stored as (in, out)."""
    dims = [inputs_size, layer_size] + [layer_size] * num_layers + [outputs_size]
    params = []
    for i in range(len(dims) - 1):
        fan_in, fan_out = dims[i], dims[i + 1]
        key, kw, kb = jax.random.split(key, 3)
        bound = 1.0 / jnp.sqrt(jnp.float32(fan_in))
        w = jax.random.uniform(kw, (fan_in, fan_out), jnp.float32, -bound, bound)
        b = jax.random.uniform(kb, (fan_out,), jnp.float32, -bound, bound)
        params.append((w, b))
    return params


if __name__ == "__main__":
    # Small shapes consistent with the module: batch=8, inputsSize=32,
    # hidden layerSize=128 (module default is 512), outputsSize=16, numLayers=1.
    batch, inputs_size, outputs_size = 8, 32, 16
    num_layers, layer_size = 1, 128

    key = jax.random.PRNGKey(0)
    key, kx = jax.random.split(key)
    x = jax.random.normal(kx, (batch, inputs_size), dtype=jnp.float32)

    params = init_lr_model_params(
        key, inputs_size, outputs_size, num_layers=num_layers, layer_size=layer_size
    )

    # Pure-JAX reference of the module forward (nn.Sequential).
    ref = jnp.tanh(x @ params[0][0] + params[0][1])
    for w, b in params[1:-1]:
        ref = jnp.maximum(ref @ w + b, 0.0)
    ref = ref @ params[-1][0] + params[-1][1]

    # f32 path: bit-accurate parity with the PyTorch module.
    prepared_f32 = prepare_lr_params(params, compute_dtype=jnp.float32)
    out = jax.block_until_ready(lr_model_forward(prepared_f32, x))
    assert out.shape == (batch, outputs_size)
    assert jnp.allclose(out, ref, atol=1e-5, rtol=1e-5)

    # bf16-MXU path (v6e/v7x: half weight DMA/VMEM, bf16 MXU operands,
    # f32 accumulation and f32 bias/activation math). dtype-aware tolerance.
    prepared_bf16 = prepare_lr_params(params, compute_dtype=jnp.bfloat16)
    out_bf16 = jax.block_until_ready(lr_model_forward(prepared_bf16, x))
    assert out_bf16.shape == (batch, outputs_size)
    assert jnp.allclose(out_bf16, ref, atol=5e-2, rtol=5e-2)

    print("KERNEL_OK")
</pallas_src>

<mosaic_0001>
module attributes {stable_mosaic.version = 11 : i64} {
  func.func @_fused_mlp_kernel(%arg0: i32, %arg1: memref<8x32xf32, #tpu.memory_space<vmem>>, %arg2: memref<32x128xf32, #tpu.memory_space<vmem>>, %arg3: memref<1x128xf32, #tpu.memory_space<vmem>>, %arg4: memref<128x128xf32, #tpu.memory_space<vmem>>, %arg5: memref<1x128xf32, #tpu.memory_space<vmem>>, %arg6: memref<128x16xf32, #tpu.memory_space<vmem>>, %arg7: memref<1x16xf32, #tpu.memory_space<vmem>>, %arg8: memref<8x16xf32, #tpu.memory_space<vmem>>) attributes {dimension_semantics = [#tpu.dimension_semantics<parallel>], iteration_bounds = array<i64: 1>, scalar_prefetch = 0 : i64, scratch_operands = 0 : i64, tpu.core_type = #tpu.core_type<tc>, window_params = [{transform_indices = @transform_0, window_bounds = array<i64: 8, 32>}, {pipeline_mode = #tpu.pipeline_mode<synchronous>, transform_indices = @transform_1, window_bounds = array<i64: 32, 128>}, {pipeline_mode = #tpu.pipeline_mode<synchronous>, transform_indices = @transform_2, window_bounds = array<i64: 1, 128>}, {pipeline_mode = #tpu.pipeline_mode<synchronous>, transform_indices = @transform_3, window_bounds = array<i64: 128, 128>}, {pipeline_mode = #tpu.pipeline_mode<synchronous>, transform_indices = @transform_4, window_bounds = array<i64: 1, 128>}, {pipeline_mode = #tpu.pipeline_mode<synchronous>, transform_indices = @transform_5, window_bounds = array<i64: 128, 16>}, {pipeline_mode = #tpu.pipeline_mode<synchronous>, transform_indices = @transform_6, window_bounds = array<i64: 1, 16>}, {transform_indices = @transform_7, window_bounds = array<i64: 8, 16>}]} {
    %c0 = arith.constant 0 : index
    %c0_0 = arith.constant 0 : index
    %0 = vector.load %arg1[%c0, %c0_0] : memref<8x32xf32, #tpu.memory_space<vmem>>, vector<8x32xf32>
    %c0_1 = arith.constant 0 : index
    %c0_2 = arith.constant 0 : index
    %1 = vector.load %arg2[%c0_1, %c0_2] : memref<32x128xf32, #tpu.memory_space<vmem>>, vector<32x128xf32>
    %cst = arith.constant dense<0.000000e+00> : vector<8x128xf32>
    %2 = tpu.matmul %0, %1, %cst {dimension_numbers = #tpu.dot_dimension_numbers<[1], [0], [0], [1], [0, 0, 1, 1], [], []>} : vector<8x32xf32>, vector<32x128xf32>, vector<8x128xf32> -> vector<8x128xf32>
    %c0_3 = arith.constant 0 : index
    %c0_4 = arith.constant 0 : index
    %3 = vector.load %arg3[%c0_3, %c0_4] : memref<1x128xf32, #tpu.memory_space<vmem>>, vector<1x128xf32>
    %4 = vector.broadcast %3 : vector<1x128xf32> to vector<8x128xf32>
    %5 = arith.addf %2, %4 : vector<8x128xf32>
    %6 = math.tanh %5 : vector<8x128xf32>
    %c0_5 = arith.constant 0 : index
    %c0_6 = arith.constant 0 : index
    %7 = vector.load %arg4[%c0_5, %c0_6] : memref<128x128xf32, #tpu.memory_space<vmem>>, vector<128x128xf32>
    %cst_7 = arith.constant dense<0.000000e+00> : vector<8x128xf32>
    %8 = tpu.matmul %6, %7, %cst_7 {dimension_numbers = #tpu.dot_dimension_numbers<[1], [0], [0], [1], [0, 0, 1, 1], [], []>} : vector<8x128xf32>, vector<128x128xf32>, vector<8x128xf32> -> vector<8x128xf32>
    %c0_8 = arith.constant 0 : index
    %c0_9 = arith.constant 0 : index
    %9 = vector.load %arg5[%c0_8, %c0_9] : memref<1x128xf32, #tpu.memory_space<vmem>>, vector<1x128xf32>
    %10 = vector.broadcast %9 : vector<1x128xf32> to vector<8x128xf32>
    %11 = arith.addf %8, %10 : vector<8x128xf32>
    %cst_10 = arith.constant 0.000000e+00 : f32
    %12 = vector.broadcast %cst_10 : f32 to vector<8x128xf32>
    %13 = arith.maximumf %11, %12 : vector<8x128xf32>
    %c0_11 = arith.constant 0 : index
    %c0_12 = arith.constant 0 : index
    %14 = vector.load %arg6[%c0_11, %c0_12] : memref<128x16xf32, #tpu.memory_space<vmem>>, vector<128x16xf32>
    %cst_13 = arith.constant dense<0.000000e+00> : vector<8x16xf32>
    %15 = tpu.matmul %13, %14, %cst_13 {dimension_numbers = #tpu.dot_dimension_numbers<[1], [0], [0], [1], [0, 0, 1, 1], [], []>} : vector<8x128xf32>, vector<128x16xf32>, vector<8x16xf32> -> vector<8x16xf32>
    %c0_14 = arith.constant 0 : index
    %c0_15 = arith.constant 0 : index
    %16 = vector.load %arg7[%c0_14, %c0_15] : memref<1x16xf32, #tpu.memory_space<vmem>>, vector<1x16xf32>
    %17 = vector.broadcast %16 : vector<1x16xf32> to vector<8x16xf32>
    %18 = arith.addf %15, %17 : vector<8x16xf32>
    %c0_16 = arith.constant 0 : index
    %c0_17 = arith.constant 0 : index
    %19 = vector.load %arg8[%c0_16, %c0_17] : memref<8x16xf32, #tpu.memory_space<vmem>>, vector<8x16xf32>
    tpu.vector_store %arg8[%c0_16, %c0_17], %18 {strides = array<i32>} : memref<8x16xf32, #tpu.memory_space<vmem>>, vector<8x16xf32>,
    return
  }
  func.func @transform_0(%arg0: i32) -> (i32, i32) {
    %c0_i32 = arith.constant 0 : i32
    %c0_i32_0 = arith.constant 0 : i32
    return %arg0, %c0_i32 : i32, i32
  }
  func.func @transform_1(%arg0: i32) -> (i32, i32) {
    %c0_i32 = arith.constant 0 : i32
    %c0_i32_0 = arith.constant 0 : i32
    %c0_i32_1 = arith.constant 0 : i32
    return %c0_i32, %c0_i32_0 : i32, i32
  }
  func.func @transform_2(%arg0: i32) -> (i32, i32) {
    %c0_i32 = arith.constant 0 : i32
    %c0_i32_0 = arith.constant 0 : i32
    %c0_i32_1 = arith.constant 0 : i32
    return %c0_i32, %c0_i32_0 : i32, i32
  }
  func.func @transform_3(%arg0: i32) -> (i32, i32) {
    %c0_i32 = arith.constant 0 : i32
    %c0_i32_0 = arith.constant 0 : i32
    %c0_i32_1 = arith.constant 0 : i32
    return %c0_i32, %c0_i32_0 : i32, i32
  }
  func.func @transform_4(%arg0: i32) -> (i32, i32) {
    %c0_i32 = arith.constant 0 : i32
    %c0_i32_0 = arith.constant 0 : i32
    %c0_i32_1 = arith.constant 0 : i32
    return %c0_i32, %c0_i32_0 : i32, i32
  }
  func.func @transform_5(%arg0: i32) -> (i32, i32) {
    %c0_i32 = arith.constant 0 : i32
    %c0_i32_0 = arith.constant 0 : i32
    %c0_i32_1 = arith.constant 0 : i32
    return %c0_i32, %c0_i32_0 : i32, i32
  }
  func.func @transform_6(%arg0: i32) -> (i32, i32) {
    %c0_i32 = arith.constant 0 : i32
    %c0_i32_0 = arith.constant 0 : i32
    %c0_i32_1 = arith.constant 0 : i32
    return %c0_i32, %c0_i32_0 : i32, i32
  }
  func.func @transform_7(%arg0: i32) -> (i32, i32) {
    %c0_i32 = arith.constant 0 : i32
    %c0_i32_0 = arith.constant 0 : i32
    return %arg0, %c0_i32 : i32, i32
  }
}

module attributes {stable_mosaic.version = 11 : i64} {
  func.func @_fused_mlp_kernel(%arg0: i32, %arg1: memref<8x32xf32, #tpu.memory_space<vmem>>, %arg2: memref<32x128xf32, #tpu.memory_space<vmem>>, %arg3: memref<1x128xf32, #tpu.memory_space<vmem>>, %arg4: memref<128x128xf32, #tpu.memory_space<vmem>>, %arg5: memref<1x128xf32, #tpu.memory_space<vmem>>, %arg6: memref<128x16xf32, #tpu.memory_space<vmem>>, %arg7: memref<1x16xf32, #tpu.memory_space<vmem>>, %arg8: memref<8x16xf32, #tpu.memory_space<vmem>>) attributes {dimension_semantics = [#tpu.dimension_semantics<parallel>], iteration_bounds = array<i64: 1>, scalar_prefetch = 0 : i64, scratch_operands = 0 : i64, tpu.core_type = #tpu.core_type<tc>, window_params = [{transform_indices = @transform_0, window_bounds = array<i64: 8, 32>}, {pipeline_mode = #tpu.pipeline_mode<synchronous>, transform_indices = @transform_1, window_bounds = array<i64: 32, 128>}, {pipeline_mode = #tpu.pipeline_mode<synchronous>, transform_indices = @transform_2, window_bounds = array<i64: 1, 128>}, {pipeline_mode = #tpu.pipeline_mode<synchronous>, transform_indices = @transform_3, window_bounds = array<i64: 128, 128>}, {pipeline_mode = #tpu.pipeline_mode<synchronous>, transform_indices = @transform_4, window_bounds = array<i64: 1, 128>}, {pipeline_mode = #tpu.pipeline_mode<synchronous>, transform_indices = @transform_5, window_bounds = array<i64: 128, 16>}, {pipeline_mode = #tpu.pipeline_mode<synchronous>, transform_indices = @transform_6, window_bounds = array<i64: 1, 16>}, {transform_indices = @transform_7, window_bounds = array<i64: 8, 16>}]} {
    %c0 = arith.constant 0 : index
    %c0_0 = arith.constant 0 : index
    %0 = vector.load %arg1[%c0, %c0_0] : memref<8x32xf32, #tpu.memory_space<vmem>>, vector<8x32xf32>
    %c0_1 = arith.constant 0 : index
    %c0_2 = arith.constant 0 : index
    %1 = vector.load %arg2[%c0_1, %c0_2] : memref<32x128xf32, #tpu.memory_space<vmem>>, vector<32x128xf32>
    %cst = arith.constant dense<0.000000e+00> : vector<8x128xf32>
    %2 = tpu.matmul %0, %1, %cst {dimension_numbers = #tpu.dot_dimension_numbers<[1], [0], [0], [1], [0, 0, 1, 1], [], []>} : vector<8x32xf32>, vector<32x128xf32>, vector<8x128xf32> -> vector<8x128xf32>
    %c0_3 = arith.constant 0 : index
    %c0_4 = arith.constant 0 : index
    %3 = vector.load %arg3[%c0_3, %c0_4] : memref<1x128xf32, #tpu.memory_space<vmem>>, vector<1x128xf32>
    %4 = vector.broadcast %3 : vector<1x128xf32> to vector<8x128xf32>
    %5 = arith.addf %2, %4 : vector<8x128xf32>
    %6 = math.tanh %5 : vector<8x128xf32>
    %c0_5 = arith.constant 0 : index
    %c0_6 = arith.constant 0 : index
    %7 = vector.load %arg4[%c0_5, %c0_6] : memref<128x128xf32, #tpu.memory_space<vmem>>, vector<128x128xf32>
    %cst_7 = arith.constant dense<0.000000e+00> : vector<8x128xf32>
    %8 = tpu.matmul %6, %7, %cst_7 {dimension_numbers = #tpu.dot_dimension_numbers<[1], [0], [0], [1], [0, 0, 1, 1], [], []>} : vector<8x128xf32>, vector<128x128xf32>, vector<8x128xf32> -> vector<8x128xf32>
    %c0_8 = arith.constant 0 : index
    %c0_9 = arith.constant 0 : index
    %9 = vector.load %arg5[%c0_8, %c0_9] : memref<1x128xf32, #tpu.memory_space<vmem>>, vector<1x128xf32>
    %10 = vector.broadcast %9 : vector<1x128xf32> to vector<8x128xf32>
    %11 = arith.addf %8, %10 : vector<8x128xf32>
    %cst_10 = arith.constant 0.000000e+00 : f32
    %12 = vector.broadcast %cst_10 : f32 to vector<8x128xf32>
    %13 = arith.maximumf %11, %12 : vector<8x128xf32>
    %c0_11 = arith.constant 0 : index
    %c0_12 = arith.constant 0 : index
    %14 = vector.load %arg6[%c0_11, %c0_12] : memref<128x16xf32, #tpu.memory_space<vmem>>, vector<128x16xf32>
    %cst_13 = arith.constant dense<0.000000e+00> : vector<8x16xf32>
    %15 = tpu.matmul %13, %14, %cst_13 {dimension_numbers = #tpu.dot_dimension_numbers<[1], [0], [0], [1], [0, 0, 1, 1], [], []>} : vector<8x128xf32>, vector<128x16xf32>, vector<8x16xf32> -> vector<8x16xf32>
    %c0_14 = arith.constant 0 : index
    %c0_15 = arith.constant 0 : index
    %16 = vector.load %arg7[%c0_14, %c0_15] : memref<1x16xf32, #tpu.memory_space<vmem>>, vector<1x16xf32>
    %17 = vector.broadcast %16 : vector<1x16xf32> to vector<8x16xf32>
    %18 = arith.addf %15, %17 : vector<8x16xf32>
    %c0_16 = arith.constant 0 : index
    %c0_17 = arith.constant 0 : index
    %19 = vector.load %arg8[%c0_16, %c0_17] : memref<8x16xf32, #tpu.memory_space<vmem>>, vector<8x16xf32>
    tpu.vector_store %arg8[%c0_16, %c0_17], %18 {strides = array<i32>} : memref<8x16xf32, #tpu.memory_space<vmem>>, vector<8x16xf32>,
    return
  }
  func.func @transform_0(%arg0: i32) -> (i32, i32) {
    %c0_i32 = arith.constant 0 : i32
    %c0_i32_0 = arith.constant 0 : i32
    return %arg0, %c0_i32 : i32, i32
  }
  func.func @transform_1(%arg0: i32) -> (i32, i32) {
    %c0_i32 = arith.constant 0 : i32
    %c0_i32_0 = arith.constant 0 : i32
    %c0_i32_1 = arith.constant 0 : i32
    return %c0_i32, %c0_i32_0 : i32, i32
  }
  func.func @transform_2(%arg0: i32) -> (i32, i32) {
    %c0_i32 = arith.constant 0 : i32
    %c0_i32_0 = arith.constant 0 : i32
    %c0_i32_1 = arith.constant 0 : i32
    return %c0_i32, %c0_i32_0 : i32, i32
  }
  func.func @transform_3(%arg0: i32) -> (i32, i32) {
    %c0_i32 = arith.constant 0 : i32
    %c0_i32_0 = arith.constant 0 : i32
    %c0_i32_1 = arith.constant 0 : i32
    return %c0_i32, %c0_i32_0 : i32, i32
  }
  func.func @transform_4(%arg0: i32) -> (i32, i32) {
    %c0_i32 = arith.constant 0 : i32
    %c0_i32_0 = arith.constant 0 : i32
    %c0_i32_1 = arith.constant 0 : i32
    return %c0_i32, %c0_i32_0 : i32, i32
  }
  func.func @transform_5(%arg0: i32) -> (i32, i32) {
    %c0_i32 = arith.constant 0 : i32
    %c0_i32_0 = arith.constant 0 : i32
    %c0_i32_1 = arith.constant 0 : i32
    return %c0_i32, %c0_i32_0 : i32, i32
  }
  func.func @transform_6(%arg0: i32) -> (i32, i32) {
    %c0_i32 = arith.constant 0 : i32
    %c0_i32_0 = arith.constant 0 : i32
    %c0_i32_1 = arith.constant 0 : i32
    return %c0_i32, %c0_i32_0 : i32, i32
  }
  func.func @transform_7(%arg0: i32) -> (i32, i32) {
    %c0_i32 = arith.constant 0 : i32
    %c0_i32_0 = arith.constant 0 : i32
    return %arg0, %c0_i32 : i32, i32
  }
}

</mosaic_0001>

<llo_original>
// kernel: tpu_custom_call.1
$region0: #{tpu_custom_call.1}
  #allocation0 [shape = 'u32[]', space=smem, size = 0x4, offset = 0x4, fixed_abs, tag = 'smem constant byte address 0x4 - core index']
  #allocation1 [shape = 'u32[144,128]{1,0:T(1,128)}', space=vmem, size = 0x12000, scoped, tag = 'internal scratch']
  %s0 = inlined_call_operand.vmem [shape: f32[8,32], index: 0, kind: input, shape index: {}]
  %s1 = inlined_call_operand.hbm [shape: f32[32,128], index: 1, kind: input, shape index: {}]
  %s2 = inlined_call_operand.vmem [shape: f32[1,128], index: 2, kind: input, shape index: {}]
  %s3 = inlined_call_operand.vmem [shape: f32[128,128], index: 3, kind: input, shape index: {}]
  %s4 = inlined_call_operand.vmem [shape: f32[1,128], index: 4, kind: input, shape index: {}]
  %s5 = inlined_call_operand.vmem [shape: f32[128,16], index: 5, kind: input, shape index: {}]
  %s6 = inlined_call_operand.vmem [shape: f32[1,16], index: 6, kind: input, shape index: {}]
  %s7 = inlined_call_operand.hbm [shape: f32[8,16], index: 7, kind: output, shape index: {}]
  %s8 = sld [smem:[#allocation0]]
  $region42: #{tpu_custom_call.1} parent=0
    _
  %s10 = ssub.s32 1, %s8
  %s11 = scalar_select 0, %s10, %s8
  $region1: #{tpu_custom_call.1} parent=0
    #allocation2 [shape = 'u8[16384]{0}', space=vmem, size = 0x4000, scoped, tag = 'input window, operand 1, single buffered']
    #allocation3 [shape = 's32[1]{0}', space=sflag, size = 0x4, scoped, tag = 'scoped memory for tpu_custom_call.1']
    #allocation4 [shape = 's32[1]{0}', space=sflag, size = 0x4, scoped, tag = 'scoped memory for tpu_custom_call.1']
    #allocation5 [shape = 'u8[4096]{0}', space=vmem, size = 0x1000, scoped, tag = 'output window, operand 0, single buffered']
    %12 = vsyncpa [#allocation3], 0
    %13 = vsyncpa [#allocation4], 0
    // Predicated region
    $region2: #{tpu_custom_call.1} parent=1 // pred_check
      _
    $region3: #{tpu_custom_call.1} parent=1 // pred_check_branch
      %15 = sbr.rel (0) target = $region5
    $region4: #{tpu_custom_call.1} parent=1 // pred_region
      _
    $region5: #{tpu_custom_call.1} parent=1 // pred_fallthru
      _
    // Predicated region
    $region6: #{tpu_custom_call.1} parent=1 // pred_check
      _
    $region7: #{tpu_custom_call.1} parent=1 // pred_check_branch
      %17 = sbr.rel (0) target = $region9
    $region8: #{tpu_custom_call.1} parent=1 // pred_region
      %s19 = ssub.s32 512, 512
      %20 = vsyncadd [#allocation3], %s19
      %s21 = sshll.u32 [#allocation2], 4
      %s22 = int_to_ptr.vmem [resolvable:$true] %s21
      %27 = dma.hbm_to_vmem [thread:$0]  %s1, 512, %s22, [#allocation3], 128, 128, 8
    $region9: #{tpu_custom_call.1} parent=1 // pred_fallthru
      _
    // Predicated region
    $region10: #{tpu_custom_call.1} parent=1 // pred_check
      _
    $region11: #{tpu_custom_call.1} parent=1 // pred_check_branch
      %29 = sbr.rel (0) target = $region13
    $region12: #{tpu_custom_call.1} parent=1 // pred_region
      _
    $region13: #{tpu_custom_call.1} parent=1 // pred_fallthru
      _
    // Predicated region
    $region14: #{tpu_custom_call.1} parent=1 // pred_check
      _
    $region15: #{tpu_custom_call.1} parent=1 // pred_check_branch
      %31 = sbr.rel (0) target = $region17
    $region16: #{tpu_custom_call.1} parent=1 // pred_region
      _
    $region17: #{tpu_custom_call.1} parent=1 // pred_fallthru
      _
    // Predicated region
    $region18: #{tpu_custom_call.1} parent=1 // pred_check
      _
    $region19: #{tpu_custom_call.1} parent=1 // pred_check_branch
      %33 = sbr.rel (0) target = $region21
    $region20: #{tpu_custom_call.1} parent=1 // pred_region
      _
    $region21: #{tpu_custom_call.1} parent=1 // pred_fallthru
      _
    // Predicated region
    $region22: #{tpu_custom_call.1} parent=1 // pred_check
      _
    $region23: #{tpu_custom_call.1} parent=1 // pred_check_branch
      %35 = sbr.rel (0) target = $region25
    $region24: #{tpu_custom_call.1} parent=1 // pred_region
      _
    $region25: #{tpu_custom_call.1} parent=1 // pred_fallthru
      _
    // Predicated region
    $region26: #{tpu_custom_call.1} parent=1 // pred_check
      _
    $region27: #{tpu_custom_call.1} parent=1 // pred_check_branch
      %37 = sbr.rel (0) target = $region29
    $region28: #{tpu_custom_call.1} parent=1 // pred_region
      _
    $region29: #{tpu_custom_call.1} parent=1 // pred_fallthru
      _
    // Predicated region
    $region30: #{tpu_custom_call.1} parent=1 // pred_check
      _
    $region31: #{tpu_custom_call.1} parent=1 // pred_check_branch
      %39 = sbr.rel (0) target = $region33
    $region32: #{tpu_custom_call.1} parent=1 // pred_region
      %40 = dma.done [#allocation3], 512
    $region33: #{tpu_custom_call.1} parent=1 // pred_fallthru
      _
    %v41 = vld [vmem:[%s0] sm:$0xff]
    %v42 = vld [vmem:[#allocation2] sm:$0xff]
    %v43 = vld [vmem:[#allocation2 + $0x8] sm:$0xff]
    %v44 = vld [vmem:[#allocation2 + $0x10] sm:$0xff]
    %v45 = vld [vmem:[#allocation2 + $0x18] sm:$0xff]
    %v46 = vld [vmem:[%s2] sm:$0x1]
    %v48 = vlaneseq
    %v49 = vshrl.u32 %v48, 7
    %v50 = vsub.s32 0, %v49
    %v51 = vrot.slane %v46, %v50
    %vm53 = vcmask 261120
    %v55 = vsel %vm53, %v41, 0
    %57 = vmatprep.subr.mxu0 0.0
    %58 = vmatpush1.msra.mxu0 0.0
    %59 = vmatprep.subr.mxu0 0.0
    %60 = vmatpush1.msra.mxu0 0.0
    %61 = vmatprep.subr.mxu0 0.0
    %62 = vmatpush1.msra.mxu0 0.0
    %63 = vmatprep.subr.mxu0 0.0
    %64 = vmatpush1.msra.mxu0 0.0
    %65 = vmatprep.subr.mxu0 0.0
    %66 = vmatpush1.msra.mxu0 0.0
    %67 = vmatprep.subr.mxu0 0.0
    %68 = vmatpush1.msra.mxu0 0.0
    %69 = vmatprep.subr.mxu0 0.0
    %70 = vmatpush1.msra.mxu0 0.0
    %71 = vmatprep.subr.mxu0 0.0
    %72 = vmatpush1.msra.mxu0 0.0
    %73 = vmatprep.subr.mxu0 0.0
    %74 = vmatpush1.msra.mxu0 0.0
    %75 = vmatprep.subr.mxu0 0.0
    %76 = vmatpush1.msra.mxu0 0.0
    %77 = vmatprep.subr.mxu0 0.0
    %78 = vmatpush1.msra.mxu0 0.0
    %79 = vmatprep.subr.mxu0 0.0
    %80 = vmatpush1.msra.mxu0 0.0
    %81 = vmatprep.subr.mxu0 0.0
    %82 = vmatpush1.msra.mxu0 %v45
    %83 = vmatprep.subr.mxu0 0.0
    %84 = vmatpush1.msra.mxu0 %v44
    %85 = vmatprep.subr.mxu0 0.0
    %86 = vmatpush1.msra.mxu0 %v43
    %87 = vmatprep.subr.mxu0 0.0
    %88 = vmatpush1.msra.mxu0 %v42
    %89 = vmatprep.subr.mxu0 0.0
    %90 = vmatpush2.msra.mxu0 0.0
    %91 = vmatprep.subr.mxu0 0.0
    %92 = vmatpush2.msra.mxu0 0.0
    %93 = vmatprep.subr.mxu0 0.0
    %94 = vmatpush2.msra.mxu0 0.0
    %95 = vmatprep.subr.mxu0 0.0
    %96 = vmatpush2.msra.mxu0 0.0
    %97 = vmatprep.subr.mxu0 0.0
    %98 = vmatpush2.msra.mxu0 0.0
    %99 = vmatprep.subr.mxu0 0.0
    %100 = vmatpush2.msra.mxu0 0.0
    %101 = vmatprep.subr.mxu0 0.0
    %102 = vmatpush2.msra.mxu0 0.0
    %103 = vmatprep.subr.mxu0 0.0
    %104 = vmatpush2.msra.mxu0 0.0
    %105 = vmatprep.subr.mxu0 0.0
    %106 = vmatpush2.msra.mxu0 0.0
    %107 = vmatprep.subr.mxu0 0.0
    %108 = vmatpush2.msra.mxu0 0.0
    %109 = vmatprep.subr.mxu0 0.0
    %110 = vmatpush2.msra.mxu0 0.0
    %111 = vmatprep.subr.mxu0 0.0
    %112 = vmatpush2.msra.mxu0 0.0
    %113 = vmatprep.subr.mxu0 0.0
    %114 = vmatpush2.msra.mxu0 0.0
    %115 = vmatprep.subr.mxu0 0.0
    %116 = vmatpush2.msra.mxu0 0.0
    %117 = vmatprep.subr.mxu0 0.0
    %118 = vmatpush2.msra.mxu0 0.0
    %119 = vmatprep.subr.mxu0 0.0
    %120 = vmatpush2.msra.mxu0 0.0
    %121 = vmatprep.mubr.f32.mxu0 0.0
    %122 = vmatmul.mubr.f32.gmra.mxu0 %v55
    %v123 = vpop.f32.mrf.mxu0
    %v124 = vadd.f32 %v51, %v123
    %v125 = vpop.f32.mrf.mxu0
    %126 = vdwg.mxu0
    %v127 = vtanh.pop %v124
    %v128 = vld [vmem:[%s3] sm:$0xff]
    %v129 = vld [vmem:[%s3 + $0x8] sm:$0xff]
    %v130 = vld [vmem:[%s3 + $0x10] sm:$0xff]
    %v131 = vld [vmem:[%s3 + $0x18] sm:$0xff]
    %v132 = vld [vmem:[%s3 + $0x20] sm:$0xff]
    %v133 = vld [vmem:[%s3 + $0x28] sm:$0xff]
    %v134 = vld [vmem:[%s3 + $0x30] sm:$0xff]
    %v135 = vld [vmem:[%s3 + $0x38] sm:$0xff]
    %v136 = vld [vmem:[%s3 + $0x40] sm:$0xff]
    %v137 = vld [vmem:[%s3 + $0x48] sm:$0xff]
    %v138 = vld [vmem:[%s3 + $0x50] sm:$0xff]
    %v139 = vld [vmem:[%s3 + $0x58] sm:$0xff]
    %v140 = vld [vmem:[%s3 + $0x60] sm:$0xff]
    %v141 = vld [vmem:[%s3 + $0x68] sm:$0xff]
    %v142 = vld [vmem:[%s3 + $0x70] sm:$0xff]
    %v143 = vld [vmem:[%s3 + $0x78] sm:$0xff]
    %v144 = vld [vmem:[%s4] sm:$0x1]
    %v146 = vlaneseq
    %v147 = vshrl.u32 %v146, 7
    %v148 = vsub.s32 0, %v147
    %v149 = vrot.slane %v144, %v148
    %151 = vmatprep.subr.mxu0 0.0
    %152 = vmatpush1.msra.mxu0 %v143
    %153 = vmatprep.subr.mxu0 0.0
    %154 = vmatpush1.msra.mxu0 %v142
    %155 = vmatprep.subr.mxu0 0.0
    %156 = vmatpush1.msra.mxu0 %v141
    %157 = vmatprep.subr.mxu0 0.0
    %158 = vmatpush1.msra.mxu0 %v140
    %159 = vmatprep.subr.mxu0 0.0
    %160 = vmatpush1.msra.mxu0 %v139
    %161 = vmatprep.subr.mxu0 0.0
    %162 = vmatpush1.msra.mxu0 %v138
    %163 = vmatprep.subr.mxu0 0.0
    %164 = vmatpush1.msra.mxu0 %v137
    %165 = vmatprep.subr.mxu0 0.0
    %166 = vmatpush1.msra.mxu0 %v136
    %167 = vmatprep.subr.mxu0 0.0
    %168 = vmatpush1.msra.mxu0 %v135
    %169 = vmatprep.subr.mxu0 0.0
    %170 = vmatpush1.msra.mxu0 %v134
    %171 = vmatprep.subr.mxu0 0.0
    %172 = vmatpush1.msra.mxu0 %v133
    %173 = vmatprep.subr.mxu0 0.0
    %174 = vmatpush1.msra.mxu0 %v132
    %175 = vmatprep.subr.mxu0 0.0
    %176 = vmatpush1.msra.mxu0 %v131
    %177 = vmatprep.subr.mxu0 0.0
    %178 = vmatpush1.msra.mxu0 %v130
    %179 = vmatprep.subr.mxu0 0.0
    %180 = vmatpush1.msra.mxu0 %v129
    %181 = vmatprep.subr.mxu0 0.0
    %182 = vmatpush1.msra.mxu0 %v128
    %183 = vmatprep.subr.mxu0 0.0
    %184 = vmatpush2.msra.mxu0 0.0
    %185 = vmatprep.subr.mxu0 0.0
    %186 = vmatpush2.msra.mxu0 0.0
    %187 = vmatprep.subr.mxu0 0.0
    %188 = vmatpush2.msra.mxu0 0.0
    %189 = vmatprep.subr.mxu0 0.0
    %190 = vmatpush2.msra.mxu0 0.0
    %191 = vmatprep.subr.mxu0 0.0
    %192 = vmatpush2.msra.mxu0 0.0
    %193 = vmatprep.subr.mxu0 0.0
    %194 = vmatpush2.msra.mxu0 0.0
    %195 = vmatprep.subr.mxu0 0.0
    %196 = vmatpush2.msra.mxu0 0.0
    %197 = vmatprep.subr.mxu0 0.0
    %198 = vmatpush2.msra.mxu0 0.0
    %199 = vmatprep.subr.mxu0 0.0
    %200 = vmatpush2.msra.mxu0 0.0
    %201 = vmatprep.subr.mxu0 0.0
    %202 = vmatpush2.msra.mxu0 0.0
    %203 = vmatprep.subr.mxu0 0.0
    %204 = vmatpush2.msra.mxu0 0.0
    %205 = vmatprep.subr.mxu0 0.0
    %206 = vmatpush2.msra.mxu0 0.0
    %207 = vmatprep.subr.mxu0 0.0
    %208 = vmatpush2.msra.mxu0 0.0
    %209 = vmatprep.subr.mxu0 0.0
    %210 = vmatpush2.msra.mxu0 0.0
    %211 = vmatprep.subr.mxu0 0.0
    %212 = vmatpush2.msra.mxu0 0.0
    %213 = vmatprep.subr.mxu0 0.0
    %214 = vmatpush2.msra.mxu0 0.0
    %215 = vmatprep.mubr.f32.mxu0 0.0
    %216 = vmatmul.mubr.f32.gmra.mxu0 %v127
    %v217 = vpop.f32.mrf.mxu0
    %v218 = vadd.f32 %v149, %v217
    %v219 = vpop.f32.mrf.mxu0
    %220 = vdwg.mxu0
    %v221 = vmax.f32 %v218, 0.0
    %v222 = vld [vmem:[%s5] sm:$0xff]
    %v223 = vld [vmem:[%s5 + $0x8] sm:$0xff]
    %v224 = vld [vmem:[%s5 + $0x10] sm:$0xff]
    %v225 = vld [vmem:[%s5 + $0x18] sm:$0xff]
    %v226 = vld [vmem:[%s5 + $0x20] sm:$0xff]
    %v227 = vld [vmem:[%s5 + $0x28] sm:$0xff]
    %v228 = vld [vmem:[%s5 + $0x30] sm:$0xff]
    %v229 = vld [vmem:[%s5 + $0x38] sm:$0xff]
    %v230 = vld [vmem:[%s5 + $0x40] sm:$0xff]
    %v231 = vld [vmem:[%s5 + $0x48] sm:$0xff]
    %v232 = vld [vmem:[%s5 + $0x50] sm:$0xff]
    %v233 = vld [vmem:[%s5 + $0x58] sm:$0xff]
    %v234 = vld [vmem:[%s5 + $0x60] sm:$0xff]
    %v235 = vld [vmem:[%s5 + $0x68] sm:$0xff]
    %v236 = vld [vmem:[%s5 + $0x70] sm:$0xff]
    %v237 = vld [vmem:[%s5 + $0x78] sm:$0xff]
    %v238 = vld [vmem:[%s6] sm:$0x1]
    %v240 = vlaneseq
    %v241 = vshrl.u32 %v240, 7
    %v242 = vsub.s32 0, %v241
    %v243 = vrot.slane %v238, %v242
    %245 = vmatprep.subr.mxu0 0.0
    %246 = vmatpush1.msra.mxu0 %v237
    %247 = vmatprep.subr.mxu0 0.0
    %248 = vmatpush1.msra.mxu0 %v236
    %249 = vmatprep.subr.mxu0 0.0
    %250 = vmatpush1.msra.mxu0 %v235
    %251 = vmatprep.subr.mxu0 0.0
    %252 = vmatpush1.msra.mxu0 %v234
    %253 = vmatprep.subr.mxu0 0.0
    %254 = vmatpush1.msra.mxu0 %v233
    %255 = vmatprep.subr.mxu0 0.0
    %256 = vmatpush1.msra.mxu0 %v232
    %257 = vmatprep.subr.mxu0 0.0
    %258 = vmatpush1.msra.mxu0 %v231
    %259 = vmatprep.subr.mxu0 0.0
    %260 = vmatpush1.msra.mxu0 %v230
    %261 = vmatprep.subr.mxu0 0.0
    %262 = vmatpush1.msra.mxu0 %v229
    %263 = vmatprep.subr.mxu0 0.0
    %264 = vmatpush1.msra.mxu0 %v228
    %265 = vmatprep.subr.mxu0 0.0
    %266 = vmatpush1.msra.mxu0 %v227
    %267 = vmatprep.subr.mxu0 0.0
    %268 = vmatpush1.msra.mxu0 %v226
    %269 = vmatprep.subr.mxu0 0.0
    %270 = vmatpush1.msra.mxu0 %v225
    %271 = vmatprep.subr.mxu0 0.0
    %272 = vmatpush1.msra.mxu0 %v224
    %273 = vmatprep.subr.mxu0 0.0
    %274 = vmatpush1.msra.mxu0 %v223
    %275 = vmatprep.subr.mxu0 0.0
    %276 = vmatpush1.msra.mxu0 %v222
    %277 = vmatprep.subr.mxu0 0.0
    %278 = vmatpush2.msra.mxu0 0.0
    %279 = vmatprep.subr.mxu0 0.0
    %280 = vmatpush2.msra.mxu0 0.0
    %281 = vmatprep.subr.mxu0 0.0
    %282 = vmatpush2.msra.mxu0 0.0
    %283 = vmatprep.subr.mxu0 0.0
    %284 = vmatpush2.msra.mxu0 0.0
    %285 = vmatprep.subr.mxu0 0.0
    %286 = vmatpush2.msra.mxu0 0.0
    %287 = vmatprep.subr.mxu0 0.0
    %288 = vmatpush2.msra.mxu0 0.0
    %289 = vmatprep.subr.mxu0 0.0
    %290 = vmatpush2.msra.mxu0 0.0
    %291 = vmatprep.subr.mxu0 0.0
    %292 = vmatpush2.msra.mxu0 0.0
    %293 = vmatprep.subr.mxu0 0.0
    %294 = vmatpush2.msra.mxu0 0.0
    %295 = vmatprep.subr.mxu0 0.0
    %296 = vmatpush2.msra.mxu0 0.0
    %297 = vmatprep.subr.mxu0 0.0
    %298 = vmatpush2.msra.mxu0 0.0
    %299 = vmatprep.subr.mxu0 0.0
    %300 = vmatpush2.msra.mxu0 0.0
    %301 = vmatprep.subr.mxu0 0.0
    %302 = vmatpush2.msra.mxu0 0.0
    %303 = vmatprep.subr.mxu0 0.0
    %304 = vmatpush2.msra.mxu0 0.0
    %305 = vmatprep.subr.mxu0 0.0
    %306 = vmatpush2.msra.mxu0 0.0
    %307 = vmatprep.subr.mxu0 0.0
    %308 = vmatpush2.msra.mxu0 0.0
    %309 = vmatprep.mubr.f32.mxu0 0.0
    %310 = vmatmul.mubr.f32.gmra.mxu0 %v221
    %v311 = vpop.f32.mrf.mxu0
    %v312 = vadd.f32 %v243, %v311
    %v313 = vpop.f32.mrf.mxu0
    %314 = vdwg.mxu0
    %vm315 = vcmask 130048
    %316 = vst.msk [vmem:[#allocation5] sm:$0xff] %vm315, %v312
    // Predicated region
    $region34: #{tpu_custom_call.1} parent=1 // pred_check
      _
    $region35: #{tpu_custom_call.1} parent=1 // pred_check_branch
      %318 = sbr.rel (0) target = $region37
    $region36: #{tpu_custom_call.1} parent=1 // pred_region
      %s320 = ssub.s32 128, 128
      %321 = vsyncadd [#allocation4], %s320
      %s323 = sshll.u32 [#allocation5], 4
      %s324 = int_to_ptr.vmem [resolvable:$true] %s323
      %326 = dma.vmem_to_hbm [thread:$0]  %s324, 128, %s7, [#allocation4]
    $region37: #{tpu_custom_call.1} parent=1 // pred_fallthru
      _
    // Predicated region
    $region38: #{tpu_custom_call.1} parent=1 // pred_check
      _
    $region39: #{tpu_custom_call.1} parent=1 // pred_check_branch
      %328 = sbr.rel (0) target = $region41
    $region40: #{tpu_custom_call.1} parent=1 // pred_region
      %329 = dma.done [#allocation4], 128
    $region41: #{tpu_custom_call.1} parent=1 // pred_fallthru
      _
    %330 = vsyncpa [#allocation3], 1
    %331 = vsyncpa [#allocation4], 1

// kernel: tpu_custom_call.1
$region0: #{tpu_custom_call.1}
  #allocation0 [shape = 'u32[]', space=smem, size = 0x4, offset = 0x4, fixed_abs, tag = 'smem constant byte address 0x4 - core index']
  #allocation1 [shape = 'u32[144,128]{1,0:T(1,128)}', space=vmem, size = 0x12000, scoped, tag = 'internal scratch']
  %s0 = inlined_call_operand.vmem [shape: f32[8,32], index: 0, kind: input, shape index: {}]
  %s1 = inlined_call_operand.hbm [shape: f32[32,128], index: 1, kind: input, shape index: {}]
  %s2 = inlined_call_operand.vmem [shape: f32[1,128], index: 2, kind: input, shape index: {}]
  %s3 = inlined_call_operand.vmem [shape: f32[128,128], index: 3, kind: input, shape index: {}]
  %s4 = inlined_call_operand.vmem [shape: f32[1,128], index: 4, kind: input, shape index: {}]
  %s5 = inlined_call_operand.vmem [shape: f32[128,16], index: 5, kind: input, shape index: {}]
  %s6 = inlined_call_operand.vmem [shape: f32[1,16], index: 6, kind: input, shape index: {}]
  %s7 = inlined_call_operand.hbm [shape: f32[8,16], index: 7, kind: output, shape index: {}]
  %s8 = sld [smem:[#allocation0]]
  $region42: #{tpu_custom_call.1} parent=0
    _
  %s10 = ssub.s32 1, %s8
  %s11 = scalar_select 0, %s10, %s8
  $region1: #{tpu_custom_call.1} parent=0
    #allocation2 [shape = 'u8[16384]{0}', space=vmem, size = 0x4000, scoped, tag = 'input window, operand 1, single buffered']
    #allocation3 [shape = 's32[1]{0}', space=sflag, size = 0x4, scoped, tag = 'scoped memory for tpu_custom_call.1']
    #allocation4 [shape = 's32[1]{0}', space=sflag, size = 0x4, scoped, tag = 'scoped memory for tpu_custom_call.1']
    #allocation5 [shape = 'u8[4096]{0}', space=vmem, size = 0x1000, scoped, tag = 'output window, operand 0, single buffered']
    %12 = vsyncpa [#allocation3], 0
    %13 = vsyncpa [#allocation4], 0
    // Predicated region
    $region2: #{tpu_custom_call.1} parent=1 // pred_check
      _
    $region3: #{tpu_custom_call.1} parent=1 // pred_check_branch
      %15 = sbr.rel (0) target = $region5
    $region4: #{tpu_custom_call.1} parent=1 // pred_region
      _
    $region5: #{tpu_custom_call.1} parent=1 // pred_fallthru
      _
    // Predicated region
    $region6: #{tpu_custom_call.1} parent=1 // pred_check
      _
    $region7: #{tpu_custom_call.1} parent=1 // pred_check_branch
      %17 = sbr.rel (0) target = $region9
    $region8: #{tpu_custom_call.1} parent=1 // pred_region
      %s19 = ssub.s32 512, 512
      %20 = vsyncadd [#allocation3], %s19
      %s21 = sshll.u32 [#allocation2], 4
      %s22 = int_to_ptr.vmem [resolvable:$true] %s21
      %27 = dma.hbm_to_vmem [thread:$0]  %s1, 512, %s22, [#allocation3], 128, 128, 8
    $region9: #{tpu_custom_call.1} parent=1 // pred_fallthru
      _
    // Predicated region
    $region10: #{tpu_custom_call.1} parent=1 // pred_check
      _
    $region11: #{tpu_custom_call.1} parent=1 // pred_check_branch
      %29 = sbr.rel (0) target = $region13
    $region12: #{tpu_custom_call.1} parent=1 // pred_region
      _
    $region13: #{tpu_custom_call.1} parent=1 // pred_fallthru
      _
    // Predicated region
    $region14: #{tpu_custom_call.1} parent=1 // pred_check
      _
    $region15: #{tpu_custom_call.1} parent=1 // pred_check_branch
      %31 = sbr.rel (0) target = $region17
    $region16: #{tpu_custom_call.1} parent=1 // pred_region
      _
    $region17: #{tpu_custom_call.1} parent=1 // pred_fallthru
      _
    // Predicated region
    $region18: #{tpu_custom_call.1} parent=1 // pred_check
      _
    $region19: #{tpu_custom_call.1} parent=1 // pred_check_branch
      %33 = sbr.rel (0) target = $region21
    $region20: #{tpu_custom_call.1} parent=1 // pred_region
      _
    $region21: #{tpu_custom_call.1} parent=1 // pred_fallthru
      _
    // Predicated region
    $region22: #{tpu_custom_call.1} parent=1 // pred_check
      _
    $region23: #{tpu_custom_call.1} parent=1 // pred_check_branch
      %35 = sbr.rel (0) target = $region25
    $region24: #{tpu_custom_call.1} parent=1 // pred_region
      _
    $region25: #{tpu_custom_call.1} parent=1 // pred_fallthru
      _
    // Predicated region
    $region26: #{tpu_custom_call.1} parent=1 // pred_check
      _
    $region27: #{tpu_custom_call.1} parent=1 // pred_check_branch
      %37 = sbr.rel (0) target = $region29
    $region28: #{tpu_custom_call.1} parent=1 // pred_region
      _
    $region29: #{tpu_custom_call.1} parent=1 // pred_fallthru
      _
    // Predicated region
    $region30: #{tpu_custom_call.1} parent=1 // pred_check
      _
    $region31: #{tpu_custom_call.1} parent=1 // pred_check_branch
      %39 = sbr.rel (0) target = $region33
    $region32: #{tpu_custom_call.1} parent=1 // pred_region
      %40 = dma.done [#allocation3], 512
    $region33: #{tpu_custom_call.1} parent=1 // pred_fallthru
      _
    %v41 = vld [vmem:[%s0] sm:$0xff]
    %v42 = vld [vmem:[#allocation2] sm:$0xff]
    %v43 = vld [vmem:[#allocation2 + $0x8] sm:$0xff]
    %v44 = vld [vmem:[#allocation2 + $0x10] sm:$0xff]
    %v45 = vld [vmem:[#allocation2 + $0x18] sm:$0xff]
    %v46 = vld [vmem:[%s2] sm:$0x1]
    %v48 = vlaneseq
    %v49 = vshrl.u32 %v48, 7
    %v50 = vsub.s32 0, %v49
    %v51 = vrot.slane %v46, %v50
    %vm53 = vcmask 261120
    %v55 = vsel %vm53, %v41, 0
    %57 = vmatprep.subr.mxu0 0.0
    %58 = vmatpush1.msra.mxu0 0.0
    %59 = vmatprep.subr.mxu0 0.0
    %60 = vmatpush1.msra.mxu0 0.0
    %61 = vmatprep.subr.mxu0 0.0
    %62 = vmatpush1.msra.mxu0 0.0
    %63 = vmatprep.subr.mxu0 0.0
    %64 = vmatpush1.msra.mxu0 0.0
    %65 = vmatprep.subr.mxu0 0.0
    %66 = vmatpush1.msra.mxu0 0.0
    %67 = vmatprep.subr.mxu0 0.0
    %68 = vmatpush1.msra.mxu0 0.0
    %69 = vmatprep.subr.mxu0 0.0
    %70 = vmatpush1.msra.mxu0 0.0
    %71 = vmatprep.subr.mxu0 0.0
    %72 = vmatpush1.msra.mxu0 0.0
    %73 = vmatprep.subr.mxu0 0.0
    %74 = vmatpush1.msra.mxu0 0.0
    %75 = vmatprep.subr.mxu0 0.0
    %76 = vmatpush1.msra.mxu0 0.0
    %77 = vmatprep.subr.mxu0 0.0
    %78 = vmatpush1.msra.mxu0 0.0
    %79 = vmatprep.subr.mxu0 0.0
    %80 = vmatpush1.msra.mxu0 0.0
    %81 = vmatprep.subr.mxu0 0.0
    %82 = vmatpush1.msra.mxu0 %v45
    %83 = vmatprep.subr.mxu0 0.0
    %84 = vmatpush1.msra.mxu0 %v44
    %85 = vmatprep.subr.mxu0 0.0
    %86 = vmatpush1.msra.mxu0 %v43
    %87 = vmatprep.subr.mxu0 0.0
    %88 = vmatpush1.msra.mxu0 %v42
    %89 = vmatprep.subr.mxu0 0.0
    %90 = vmatpush2.msra.mxu0 0.0
    %91 = vmatprep.subr.mxu0 0.0
    %92 = vmatpush2.msra.mxu0 0.0
    %93 = vmatprep.subr.mxu0 0.0
    %94 = vmatpush2.msra.mxu0 0.0
    %95 = vmatprep.subr.mxu0 0.0
    %96 = vmatpush2.msra.mxu0 0.0
    %97 = vmatprep.subr.mxu0 0.0
    %98 = vmatpush2.msra.mxu0 0.0
    %99 = vmatprep.subr.mxu0 0.0
    %100 = vmatpush2.msra.mxu0 0.0
    %101 = vmatprep.subr.mxu0 0.0
    %102 = vmatpush2.msra.mxu0 0.0
    %103 = vmatprep.subr.mxu0 0.0
    %104 = vmatpush2.msra.mxu0 0.0
    %105 = vmatprep.subr.mxu0 0.0
    %106 = vmatpush2.msra.mxu0 0.0
    %107 = vmatprep.subr.mxu0 0.0
    %108 = vmatpush2.msra.mxu0 0.0
    %109 = vmatprep.subr.mxu0 0.0
    %110 = vmatpush2.msra.mxu0 0.0
    %111 = vmatprep.subr.mxu0 0.0
    %112 = vmatpush2.msra.mxu0 0.0
    %113 = vmatprep.subr.mxu0 0.0
    %114 = vmatpush2.msra.mxu0 0.0
    %115 = vmatprep.subr.mxu0 0.0
    %116 = vmatpush2.msra.mxu0 0.0
    %117 = vmatprep.subr.mxu0 0.0
    %118 = vmatpush2.msra.mxu0 0.0
    %119 = vmatprep.subr.mxu0 0.0
    %120 = vmatpush2.msra.mxu0 0.0
    %121 = vmatprep.mubr.f32.mxu0 0.0
    %122 = vmatmul.mubr.f32.gmra.mxu0 %v55
    %v123 = vpop.f32.mrf.mxu0
    %v124 = vadd.f32 %v51, %v123
    %v125 = vpop.f32.mrf.mxu0
    %126 = vdwg.mxu0
    %v127 = vtanh.pop %v124
    %v128 = vld [vmem:[%s3] sm:$0xff]
    %v129 = vld [vmem:[%s3 + $0x8] sm:$0xff]
    %v130 = vld [vmem:[%s3 + $0x10] sm:$0xff]
    %v131 = vld [vmem:[%s3 + $0x18] sm:$0xff]
    %v132 = vld [vmem:[%s3 + $0x20] sm:$0xff]
    %v133 = vld [vmem:[%s3 + $0x28] sm:$0xff]
    %v134 = vld [vmem:[%s3 + $0x30] sm:$0xff]
    %v135 = vld [vmem:[%s3 + $0x38] sm:$0xff]
    %v136 = vld [vmem:[%s3 + $0x40] sm:$0xff]
    %v137 = vld [vmem:[%s3 + $0x48] sm:$0xff]
    %v138 = vld [vmem:[%s3 + $0x50] sm:$0xff]
    %v139 = vld [vmem:[%s3 + $0x58] sm:$0xff]
    %v140 = vld [vmem:[%s3 + $0x60] sm:$0xff]
    %v141 = vld [vmem:[%s3 + $0x68] sm:$0xff]
    %v142 = vld [vmem:[%s3 + $0x70] sm:$0xff]
    %v143 = vld [vmem:[%s3 + $0x78] sm:$0xff]
    %v144 = vld [vmem:[%s4] sm:$0x1]
    %v146 = vlaneseq
    %v147 = vshrl.u32 %v146, 7
    %v148 = vsub.s32 0, %v147
    %v149 = vrot.slane %v144, %v148
    %151 = vmatprep.subr.mxu0 0.0
    %152 = vmatpush1.msra.mxu0 %v143
    %153 = vmatprep.subr.mxu0 0.0
    %154 = vmatpush1.msra.mxu0 %v142
    %155 = vmatprep.subr.mxu0 0.0
    %156 = vmatpush1.msra.mxu0 %v141
    %157 = vmatprep.subr.mxu0 0.0
    %158 = vmatpush1.msra.mxu0 %v140
    %159 = vmatprep.subr.mxu0 0.0
    %160 = vmatpush1.msra.mxu0 %v139
    %161 = vmatprep.subr.mxu0 0.0
    %162 = vmatpush1.msra.mxu0 %v138
    %163 = vmatprep.subr.mxu0 0.0
    %164 = vmatpush1.msra.mxu0 %v137
    %165 = vmatprep.subr.mxu0 0.0
    %166 = vmatpush1.msra.mxu0 %v136
    %167 = vmatprep.subr.mxu0 0.0
    %168 = vmatpush1.msra.mxu0 %v135
    %169 = vmatprep.subr.mxu0 0.0
    %170 = vmatpush1.msra.mxu0 %v134
    %171 = vmatprep.subr.mxu0 0.0
    %172 = vmatpush1.msra.mxu0 %v133
    %173 = vmatprep.subr.mxu0 0.0
    %174 = vmatpush1.msra.mxu0 %v132
    %175 = vmatprep.subr.mxu0 0.0
    %176 = vmatpush1.msra.mxu0 %v131
    %177 = vmatprep.subr.mxu0 0.0
    %178 = vmatpush1.msra.mxu0 %v130
    %179 = vmatprep.subr.mxu0 0.0
    %180 = vmatpush1.msra.mxu0 %v129
    %181 = vmatprep.subr.mxu0 0.0
    %182 = vmatpush1.msra.mxu0 %v128
    %183 = vmatprep.subr.mxu0 0.0
    %184 = vmatpush2.msra.mxu0 0.0
    %185 = vmatprep.subr.mxu0 0.0
    %186 = vmatpush2.msra.mxu0 0.0
    %187 = vmatprep.subr.mxu0 0.0
    %188 = vmatpush2.msra.mxu0 0.0
    %189 = vmatprep.subr.mxu0 0.0
    %190 = vmatpush2.msra.mxu0 0.0
    %191 = vmatprep.subr.mxu0 0.0
    %192 = vmatpush2.msra.mxu0 0.0
    %193 = vmatprep.subr.mxu0 0.0
    %194 = vmatpush2.msra.mxu0 0.0
    %195 = vmatprep.subr.mxu0 0.0
    %196 = vmatpush2.msra.mxu0 0.0
    %197 = vmatprep.subr.mxu0 0.0
    %198 = vmatpush2.msra.mxu0 0.0
    %199 = vmatprep.subr.mxu0 0.0
    %200 = vmatpush2.msra.mxu0 0.0
    %201 = vmatprep.subr.mxu0 0.0
    %202 = vmatpush2.msra.mxu0 0.0
    %203 = vmatprep.subr.mxu0 0.0
    %204 = vmatpush2.msra.mxu0 0.0
    %205 = vmatprep.subr.mxu0 0.0
    %206 = vmatpush2.msra.mxu0 0.0
    %207 = vmatprep.subr.mxu0 0.0
    %208 = vmatpush2.msra.mxu0 0.0
    %209 = vmatprep.subr.mxu0 0.0
    %210 = vmatpush2.msra.mxu0 0.0
    %211 = vmatprep.subr.mxu0 0.0
    %212 = vmatpush2.msra.mxu0 0.0
    %213 = vmatprep.subr.mxu0 0.0
    %214 = vmatpush2.msra.mxu0 0.0
    %215 = vmatprep.mubr.f32.mxu0 0.0
    %216 = vmatmul.mubr.f32.gmra.mxu0 %v127
    %v217 = vpop.f32.mrf.mxu0
    %v218 = vadd.f32 %v149, %v217
    %v219 = vpop.f32.mrf.mxu0
    %220 = vdwg.mxu0
    %v221 = vmax.f32 %v218, 0.0
    %v222 = vld [vmem:[%s5] sm:$0xff]
    %v223 = vld [vmem:[%s5 + $0x8] sm:$0xff]
    %v224 = vld [vmem:[%s5 + $0x10] sm:$0xff]
    %v225 = vld [vmem:[%s5 + $0x18] sm:$0xff]
    %v226 = vld [vmem:[%s5 + $0x20] sm:$0xff]
    %v227 = vld [vmem:[%s5 + $0x28] sm:$0xff]
    %v228 = vld [vmem:[%s5 + $0x30] sm:$0xff]
    %v229 = vld [vmem:[%s5 + $0x38] sm:$0xff]
    %v230 = vld [vmem:[%s5 + $0x40] sm:$0xff]
    %v231 = vld [vmem:[%s5 + $0x48] sm:$0xff]
    %v232 = vld [vmem:[%s5 + $0x50] sm:$0xff]
    %v233 = vld [vmem:[%s5 + $0x58] sm:$0xff]
    %v234 = vld [vmem:[%s5 + $0x60] sm:$0xff]
    %v235 = vld [vmem:[%s5 + $0x68] sm:$0xff]
    %v236 = vld [vmem:[%s5 + $0x70] sm:$0xff]
    %v237 = vld [vmem:[%s5 + $0x78] sm:$0xff]
    %v238 = vld [vmem:[%s6] sm:$0x1]
    %v240 = vlaneseq
    %v241 = vshrl.u32 %v240, 7
    %v242 = vsub.s32 0, %v241
    %v243 = vrot.slane %v238, %v242
    %245 = vmatprep.subr.mxu0 0.0
    %246 = vmatpush1.msra.mxu0 %v237
    %247 = vmatprep.subr.mxu0 0.0
    %248 = vmatpush1.msra.mxu0 %v236
    %249 = vmatprep.subr.mxu0 0.0
    %250 = vmatpush1.msra.mxu0 %v235
    %251 = vmatprep.subr.mxu0 0.0
    %252 = vmatpush1.msra.mxu0 %v234
    %253 = vmatprep.subr.mxu0 0.0
    %254 = vmatpush1.msra.mxu0 %v233
    %255 = vmatprep.subr.mxu0 0.0
    %256 = vmatpush1.msra.mxu0 %v232
    %257 = vmatprep.subr.mxu0 0.0
    %258 = vmatpush1.msra.mxu0 %v231
    %259 = vmatprep.subr.mxu0 0.0
    %260 = vmatpush1.msra.mxu0 %v230
    %261 = vmatprep.subr.mxu0 0.0
    %262 = vmatpush1.msra.mxu0 %v229
    %263 = vmatprep.subr.mxu0 0.0
    %264 = vmatpush1.msra.mxu0 %v228
    %265 = vmatprep.subr.mxu0 0.0
    %266 = vmatpush1.msra.mxu0 %v227
    %267 = vmatprep.subr.mxu0 0.0
    %268 = vmatpush1.msra.mxu0 %v226
    %269 = vmatprep.subr.mxu0 0.0
    %270 = vmatpush1.msra.mxu0 %v225
    %271 = vmatprep.subr.mxu0 0.0
    %272 = vmatpush1.msra.mxu0 %v224
    %273 = vmatprep.subr.mxu0 0.0
    %274 = vmatpush1.msra.mxu0 %v223
    %275 = vmatprep.subr.mxu0 0.0
    %276 = vmatpush1.msra.mxu0 %v222
    %277 = vmatprep.subr.mxu0 0.0
    %278 = vmatpush2.msra.mxu0 0.0
    %279 = vmatprep.subr.mxu0 0.0
    %280 = vmatpush2.msra.mxu0 0.0
    %281 = vmatprep.subr.mxu0 0.0
    %282 = vmatpush2.msra.mxu0 0.0
    %283 = vmatprep.subr.mxu0 0.0
    %284 = vmatpush2.msra.mxu0 0.0
    %285 = vmatprep.subr.mxu0 0.0
    %286 = vmatpush2.msra.mxu0 0.0
    %287 = vmatprep.subr.mxu0 0.0
    %288 = vmatpush2.msra.mxu0 0.0
    %289 = vmatprep.subr.mxu0 0.0
    %290 = vmatpush2.msra.mxu0 0.0
    %291 = vmatprep.subr.mxu0 0.0
    %292 = vmatpush2.msra.mxu0 0.0
    %293 = vmatprep.subr.mxu0 0.0
    %294 = vmatpush2.msra.mxu0 0.0
    %295 = vmatprep.subr.mxu0 0.0
    %296 = vmatpush2.msra.mxu0 0.0
    %297 = vmatprep.subr.mxu0 0.0
    %298 = vmatpush2.msra.mxu0 0.0
    %299 = vmatprep.subr.mxu0 0.0
    %300 = vmatpush2.msra.mxu0 0.0
    %301 = vmatprep.subr.mxu0 0.0
    %302 = vmatpush2.msra.mxu0 0.0
    %303 = vmatprep.subr.mxu0 0.0
    %304 = vmatpush2.msra.mxu0 0.0
    %305 = vmatprep.subr.mxu0 0.0
    %306 = vmatpush2.msra.mxu0 0.0
    %307 = vmatprep.subr.mxu0 0.0
    %308 = vmatpush2.msra.mxu0 0.0
    %309 = vmatprep.mubr.f32.mxu0 0.0
    %310 = vmatmul.mubr.f32.gmra.mxu0 %v221
    %v311 = vpop.f32.mrf.mxu0
    %v312 = vadd.f32 %v243, %v311
    %v313 = vpop.f32.mrf.mxu0
    %314 = vdwg.mxu0
    %vm315 = vcmask 130048
    %316 = vst.msk [vmem:[#allocation5] sm:$0xff] %vm315, %v312
    // Predicated region
    $region34: #{tpu_custom_call.1} parent=1 // pred_check
      _
    $region35: #{tpu_custom_call.1} parent=1 // pred_check_branch
      %318 = sbr.rel (0) target = $region37
    $region36: #{tpu_custom_call.1} parent=1 // pred_region
      %s320 = ssub.s32 128, 128
      %321 = vsyncadd [#allocation4], %s320
      %s323 = sshll.u32 [#allocation5], 4
      %s324 = int_to_ptr.vmem [resolvable:$true] %s323
      %326 = dma.vmem_to_hbm [thread:$0]  %s324, 128, %s7, [#allocation4]
    $region37: #{tpu_custom_call.1} parent=1 // pred_fallthru
      _
    // Predicated region
    $region38: #{tpu_custom_call.1} parent=1 // pred_check
      _
    $region39: #{tpu_custom_call.1} parent=1 // pred_check_branch
      %328 = sbr.rel (0) target = $region41
    $region40: #{tpu_custom_call.1} parent=1 // pred_region
      %329 = dma.done [#allocation4], 128
    $region41: #{tpu_custom_call.1} parent=1 // pred_fallthru
      _
    %330 = vsyncpa [#allocation3], 1
    %331 = vsyncpa [#allocation4], 1

</llo_original>
